<compile_context>
chip_gen: v6e
topology: v6e:2x2x1
jax: 0.10.0
libtpu: 0.0.40
codegen_flags: <defaults>
</compile_context>

<pallas_src>
import jax
import jax.numpy as jnp
from jax.experimental import pallas as pl
from jax.experimental.pallas import tpu as pltpu


def _same_pad_kernel(x_ref, o_ref):
    # x_ref: (TILE_R, T) VMEM tile; o_ref: (TILE_R, T_out) VMEM tile.
    # Static slice starting at lane 0 -> exact copy; only the last vreg per
    # row is a masked store when T_out % 128 != 0.
    o_ref[...] = x_ref[:, : o_ref.shape[-1]]


def _round_up(n: int, m: int) -> int:
    return (n + m - 1) // m * m


def same_pad(
    x: jnp.ndarray,
    kernel_size: int,
    causal: bool = False,
    *,
    min_t_out_for_pallas: int = 128,
    tile_rows: int | None = None,
) -> jnp.ndarray:
    """Pallas/JAX implementation of SamePad.forward for x of shape (B, C, T)."""
    if causal:
        remove = kernel_size - 1
    else:
        remove = 1 if kernel_size % 2 == 0 else 0

    if remove <= 0:
        return x  # identity, nothing to do

    B, C, T = x.shape
    T_out = T - remove
    assert T_out > 0, "remove must be smaller than the time dimension"

    # Highest-value path: short time axes would hit the masked partial-vreg
    # store regime and pay a full HBM round trip for nothing.  Return a plain
    # slice so XLA can fuse the trim into the consuming op.
    if T_out < min_t_out_for_pallas:
        return x[:, :, :T_out]

    dtype_bytes = jnp.dtype(x.dtype).itemsize
    rows = B * C

    # Sublane packing: 8 rows (f32), 16 (bf16/f16), 32 (int8/fp8).
    pack = max(8, 32 // dtype_bytes)

    # Cap each input tile at ~2 MiB; with double-buffered in + out tiles the
    # total resident VMEM stays under ~8 MiB on every generation (v5e default
    # scoped VMEM is 16 MiB, v6e/v7x 32 MiB, v7x physical 64 MiB).
    per_buf_cap_bytes = 2 * 1024 * 1024
    tile_r = max(pack, (per_buf_cap_bytes // (T * dtype_bytes)) // pack * pack)
    if tile_rows is not None:
        # Caller override (must be a multiple of 8, or >= rows).
        tile_r = tile_rows
    if rows <= tile_r:
        tile_r = rows  # single block covering the full row axis

    # TODO(synk): pathological case T*dtype_bytes > 2 MiB per row would need a
    # lane-axis split as well; not needed for conv-activation shapes.

    x2 = x.reshape(rows, T)  # metadata-only reshape
    grid = (pl.cdiv(rows, tile_r),)

    y2 = pl.pallas_call(
        _same_pad_kernel,
        out_shape=jax.ShapeDtypeStruct((rows, T_out), x.dtype),
        grid_spec=pltpu.PrefetchScalarGridSpec(
            num_scalar_prefetch=0,
            grid=grid,
            in_specs=[pl.BlockSpec((tile_r, T), lambda r: (r, 0))],
            out_specs=pl.BlockSpec((tile_r, T_out), lambda r: (r, 0)),
        ),
        compiler_params=pltpu.CompilerParams(
            # Row-tile grid shards evenly across the 2 TensorCores on v7x;
            # harmless on v5e/v6e (single TC).
            dimension_semantics=("parallel",),
            vmem_limit_bytes=32 * 1024 * 1024,
        ),
    )(x2)
    return y2.reshape(B, C, T_out)


if __name__ == "__main__":
    key = jax.random.PRNGKey(0)

    def ref(x, kernel_size, causal):
        remove = (kernel_size - 1) if causal else (1 if kernel_size % 2 == 0 else 0)
        return x[:, :, : x.shape[-1] - remove] if remove > 0 else x

    # 1) Spec-sized input (B=2, C=4, T=16): short T -> fused-slice fallback.
    x_small = jax.random.normal(key, (2, 4, 16), dtype=jnp.float32)
    y = jax.block_until_ready(same_pad(x_small, kernel_size=4, causal=False))
    assert y.shape == (2, 4, 15) and jnp.array_equal(y, ref(x_small, 4, False))

    # Causal path (remove = 3) on the same small input.
    y = jax.block_until_ready(same_pad(x_small, kernel_size=4, causal=True))
    assert y.shape == (2, 4, 13) and jnp.array_equal(y, ref(x_small, 4, True))

    # Odd kernel, non-causal -> identity (remove = 0).
    y = jax.block_until_ready(same_pad(x_small, kernel_size=3, causal=False))
    assert y.shape == x_small.shape and jnp.array_equal(y, x_small)

    # 2) Pallas streaming-copy path (T_out >= 128), f32.
    x_med = jax.random.normal(key, (2, 64, 384), dtype=jnp.float32)
    y = jax.block_until_ready(same_pad(x_med, kernel_size=4, causal=False))
    assert y.shape == (2, 64, 383) and jnp.array_equal(y, ref(x_med, 4, False))

    # 3) Pallas path with multiple row tiles and a masked tail block (bf16).
    x_tail = jax.random.normal(key, (5, 4, 256), dtype=jnp.bfloat16)
    y = jax.block_until_ready(
        same_pad(x_tail, kernel_size=6, causal=True, tile_rows=16)
    )
    assert y.shape == (5, 4, 251) and jnp.array_equal(y, ref(x_tail, 6, True))

    # 4) Force the Pallas path on the tiny spec shape (masked short-lane store
    #    regime): still bit-exact.
    y = jax.block_until_ready(
        same_pad(x_small, kernel_size=4, causal=False, min_t_out_for_pallas=1)
    )
    assert y.shape == (2, 4, 15) and jnp.array_equal(y, ref(x_small, 4, False))

    print("KERNEL_OK")
</pallas_src>

<mosaic_0001>
module attributes {stable_mosaic.version = 11 : i64} {
  func.func @_same_pad_kernel(%arg0: i32, %arg1: memref<128x384xf32, #tpu.memory_space<vmem>>, %arg2: memref<128x383xf32, #tpu.memory_space<vmem>>) attributes {dimension_semantics = [#tpu.dimension_semantics<parallel>], iteration_bounds = array<i64: 1>, scalar_prefetch = 0 : i64, scratch_operands = 0 : i64, tpu.core_type = #tpu.core_type<tc>, window_params = [{transform_indices = @transform_0, window_bounds = array<i64: 128, 384>}, {transform_indices = @transform_1, window_bounds = array<i64: 128, 383>}]} {
    %c0 = arith.constant 0 : index
    %c0_0 = arith.constant 0 : index
    %0 = vector.load %arg1[%c0, %c0_0] : memref<128x384xf32, #tpu.memory_space<vmem>>, vector<128x383xf32>
    %c0_1 = arith.constant 0 : index
    %c0_2 = arith.constant 0 : index
    %1 = vector.load %arg2[%c0_1, %c0_2] : memref<128x383xf32, #tpu.memory_space<vmem>>, vector<128x383xf32>
    tpu.vector_store %arg2[%c0_1, %c0_2], %0 {strides = array<i32>} : memref<128x383xf32, #tpu.memory_space<vmem>>, vector<128x383xf32>,
    return
  }
  func.func @transform_0(%arg0: i32) -> (i32, i32) {
    %c0_i32 = arith.constant 0 : i32
    %c0_i32_0 = arith.constant 0 : i32
    return %arg0, %c0_i32 : i32, i32
  }
  func.func @transform_1(%arg0: i32) -> (i32, i32) {
    %c0_i32 = arith.constant 0 : i32
    %c0_i32_0 = arith.constant 0 : i32
    return %arg0, %c0_i32 : i32, i32
  }
}

</mosaic_0001>

<llo_original>
// kernel: tpu_custom_call.1
$region0: #{tpu_custom_call.1}
  #allocation0 [shape = 'u32[]', space=smem, size = 0x4, offset = 0x4, fixed_abs, tag = 'smem constant byte address 0x4 - core index']
  #allocation1 [shape = 'u32[144,128]{1,0:T(1,128)}', space=vmem, size = 0x12000, scoped, tag = 'internal scratch']
  %s0 = inlined_call_operand.hbm [shape: f32[128,384], index: 0, kind: input, shape index: {}]
  %s1 = inlined_call_operand.hbm [shape: f32[128,383], index: 1, kind: output, shape index: {}]
  %s2 = sld [smem:[#allocation0]]
  $region18: #{tpu_custom_call.1} parent=0
    _
  %s4 = ssub.s32 1, %s2
  %s5 = scalar_select 0, %s4, %s2
  $region1: #{tpu_custom_call.1} parent=0
    #allocation2 [shape = 'u8[196608]{0}', space=vmem, size = 0x30000, scoped, tag = 'input window, operand 0, single buffered']
    #allocation3 [shape = 's32[1]{0}', space=sflag, size = 0x4, scoped, tag = 'scoped memory for tpu_custom_call.1']
    #allocation4 [shape = 's32[1]{0}', space=sflag, size = 0x4, scoped, tag = 'scoped memory for tpu_custom_call.1']
    #allocation5 [shape = 'u8[196608]{0}', space=vmem, size = 0x30000, scoped, tag = 'output window, operand 0, single buffered']
    %6 = vsyncpa [#allocation3], 0
    %7 = vsyncpa [#allocation4], 0
    // Predicated region
    $region2: #{tpu_custom_call.1} parent=1 // pred_check
      _
    $region3: #{tpu_custom_call.1} parent=1 // pred_check_branch
      %9 = sbr.rel (0) target = $region5
    $region4: #{tpu_custom_call.1} parent=1 // pred_region
      %s11 = ssub.s32 6144, 6144
      %12 = vsyncadd [#allocation3], %s11
      %s13 = sshll.u32 [#allocation2], 4
      %s14 = int_to_ptr.vmem [resolvable:$true] %s13
      %19 = dma.hbm_to_vmem [thread:$0]  %s0, 6144, %s14, [#allocation3], 384, 384, 24
    $region5: #{tpu_custom_call.1} parent=1 // pred_fallthru
      _
    // Predicated region
    $region6: #{tpu_custom_call.1} parent=1 // pred_check
      _
    $region7: #{tpu_custom_call.1} parent=1 // pred_check_branch
      %21 = sbr.rel (0) target = $region9
    $region8: #{tpu_custom_call.1} parent=1 // pred_region
      %22 = dma.done [#allocation3], 6144
    $region9: #{tpu_custom_call.1} parent=1 // pred_fallthru
      _
    %v23 = vld [vmem:[#allocation2] sm:$0xff]
    %v24 = vld [vmem:[#allocation2 + $0x8] sm:$0xff]
    %v25 = vld [vmem:[#allocation2 + $0x10] sm:$0xff]
    %v26 = vld [vmem:[#allocation2 + $0x18] sm:$0xff]
    %v27 = vld [vmem:[#allocation2 + $0x20] sm:$0xff]
    %v28 = vld [vmem:[#allocation2 + $0x28] sm:$0xff]
    %v29 = vld [vmem:[#allocation2 + $0x30] sm:$0xff]
    %v30 = vld [vmem:[#allocation2 + $0x38] sm:$0xff]
    %v31 = vld [vmem:[#allocation2 + $0x40] sm:$0xff]
    %v32 = vld [vmem:[#allocation2 + $0x48] sm:$0xff]
    %v33 = vld [vmem:[#allocation2 + $0x50] sm:$0xff]
    %v34 = vld [vmem:[#allocation2 + $0x58] sm:$0xff]
    %v35 = vld [vmem:[#allocation2 + $0x60] sm:$0xff]
    %v36 = vld [vmem:[#allocation2 + $0x68] sm:$0xff]
    %v37 = vld [vmem:[#allocation2 + $0x70] sm:$0xff]
    %v38 = vld [vmem:[#allocation2 + $0x78] sm:$0xff]
    %v39 = vld [vmem:[#allocation2 + $0x80] sm:$0xff]
    %v40 = vld [vmem:[#allocation2 + $0x88] sm:$0xff]
    %v41 = vld [vmem:[#allocation2 + $0x90] sm:$0xff]
    %v42 = vld [vmem:[#allocation2 + $0x98] sm:$0xff]
    %v43 = vld [vmem:[#allocation2 + $0xa0] sm:$0xff]
    %v44 = vld [vmem:[#allocation2 + $0xa8] sm:$0xff]
    %v45 = vld [vmem:[#allocation2 + $0xb0] sm:$0xff]
    %v46 = vld [vmem:[#allocation2 + $0xb8] sm:$0xff]
    %v47 = vld [vmem:[#allocation2 + $0xc0] sm:$0xff]
    %v48 = vld [vmem:[#allocation2 + $0xc8] sm:$0xff]
    %v49 = vld [vmem:[#allocation2 + $0xd0] sm:$0xff]
    %v50 = vld [vmem:[#allocation2 + $0xd8] sm:$0xff]
    %v51 = vld [vmem:[#allocation2 + $0xe0] sm:$0xff]
    %v52 = vld [vmem:[#allocation2 + $0xe8] sm:$0xff]
    %v53 = vld [vmem:[#allocation2 + $0xf0] sm:$0xff]
    %v54 = vld [vmem:[#allocation2 + $0xf8] sm:$0xff]
    %v55 = vld [vmem:[#allocation2 + $0x100] sm:$0xff]
    %v56 = vld [vmem:[#allocation2 + $0x108] sm:$0xff]
    %v57 = vld [vmem:[#allocation2 + $0x110] sm:$0xff]
    %v58 = vld [vmem:[#allocation2 + $0x118] sm:$0xff]
    %v59 = vld [vmem:[#allocation2 + $0x120] sm:$0xff]
    %v60 = vld [vmem:[#allocation2 + $0x128] sm:$0xff]
    %v61 = vld [vmem:[#allocation2 + $0x130] sm:$0xff]
    %v62 = vld [vmem:[#allocation2 + $0x138] sm:$0xff]
    %v63 = vld [vmem:[#allocation2 + $0x140] sm:$0xff]
    %v64 = vld [vmem:[#allocation2 + $0x148] sm:$0xff]
    %v65 = vld [vmem:[#allocation2 + $0x150] sm:$0xff]
    %v66 = vld [vmem:[#allocation2 + $0x158] sm:$0xff]
    %v67 = vld [vmem:[#allocation2 + $0x160] sm:$0xff]
    %v68 = vld [vmem:[#allocation2 + $0x168] sm:$0xff]
    %v69 = vld [vmem:[#allocation2 + $0x170] sm:$0xff]
    %v70 = vld [vmem:[#allocation2 + $0x178] sm:$0xff]
    %71 = vst [vmem:[#allocation5] sm:$0xff] %v23
    %72 = vst [vmem:[#allocation5 + $0x8] sm:$0xff] %v24
    %vm73 = vcmask 1039360
    %74 = vst.msk [vmem:[#allocation5 + $0x10] sm:$0xff] %vm73, %v25
    %75 = vst [vmem:[#allocation5 + $0x18] sm:$0xff] %v26
    %76 = vst [vmem:[#allocation5 + $0x20] sm:$0xff] %v27
    %77 = vst.msk [vmem:[#allocation5 + $0x28] sm:$0xff] %vm73, %v28
    %78 = vst [vmem:[#allocation5 + $0x30] sm:$0xff] %v29
    %79 = vst [vmem:[#allocation5 + $0x38] sm:$0xff] %v30
    %80 = vst.msk [vmem:[#allocation5 + $0x40] sm:$0xff] %vm73, %v31
    %81 = vst [vmem:[#allocation5 + $0x48] sm:$0xff] %v32
    %82 = vst [vmem:[#allocation5 + $0x50] sm:$0xff] %v33
    %83 = vst.msk [vmem:[#allocation5 + $0x58] sm:$0xff] %vm73, %v34
    %84 = vst [vmem:[#allocation5 + $0x60] sm:$0xff] %v35
    %85 = vst [vmem:[#allocation5 + $0x68] sm:$0xff] %v36
    %86 = vst.msk [vmem:[#allocation5 + $0x70] sm:$0xff] %vm73, %v37
    %87 = vst [vmem:[#allocation5 + $0x78] sm:$0xff] %v38
    %88 = vst [vmem:[#allocation5 + $0x80] sm:$0xff] %v39
    %89 = vst.msk [vmem:[#allocation5 + $0x88] sm:$0xff] %vm73, %v40
    %90 = vst [vmem:[#allocation5 + $0x90] sm:$0xff] %v41
    %91 = vst [vmem:[#allocation5 + $0x98] sm:$0xff] %v42
    %92 = vst.msk [vmem:[#allocation5 + $0xa0] sm:$0xff] %vm73, %v43
    %93 = vst [vmem:[#allocation5 + $0xa8] sm:$0xff] %v44
    %94 = vst [vmem:[#allocation5 + $0xb0] sm:$0xff] %v45
    %95 = vst.msk [vmem:[#allocation5 + $0xb8] sm:$0xff] %vm73, %v46
    %96 = vst [vmem:[#allocation5 + $0xc0] sm:$0xff] %v47
    %97 = vst [vmem:[#allocation5 + $0xc8] sm:$0xff] %v48
    %98 = vst.msk [vmem:[#allocation5 + $0xd0] sm:$0xff] %vm73, %v49
    %99 = vst [vmem:[#allocation5 + $0xd8] sm:$0xff] %v50
    %100 = vst [vmem:[#allocation5 + $0xe0] sm:$0xff] %v51
    %101 = vst.msk [vmem:[#allocation5 + $0xe8] sm:$0xff] %vm73, %v52
    %102 = vst [vmem:[#allocation5 + $0xf0] sm:$0xff] %v53
    %103 = vst [vmem:[#allocation5 + $0xf8] sm:$0xff] %v54
    %104 = vst.msk [vmem:[#allocation5 + $0x100] sm:$0xff] %vm73, %v55
    %105 = vst [vmem:[#allocation5 + $0x108] sm:$0xff] %v56
    %106 = vst [vmem:[#allocation5 + $0x110] sm:$0xff] %v57
    %107 = vst.msk [vmem:[#allocation5 + $0x118] sm:$0xff] %vm73, %v58
    %108 = vst [vmem:[#allocation5 + $0x120] sm:$0xff] %v59
    %109 = vst [vmem:[#allocation5 + $0x128] sm:$0xff] %v60
    %110 = vst.msk [vmem:[#allocation5 + $0x130] sm:$0xff] %vm73, %v61
    %111 = vst [vmem:[#allocation5 + $0x138] sm:$0xff] %v62
    %112 = vst [vmem:[#allocation5 + $0x140] sm:$0xff] %v63
    %113 = vst.msk [vmem:[#allocation5 + $0x148] sm:$0xff] %vm73, %v64
    %114 = vst [vmem:[#allocation5 + $0x150] sm:$0xff] %v65
    %115 = vst [vmem:[#allocation5 + $0x158] sm:$0xff] %v66
    %116 = vst.msk [vmem:[#allocation5 + $0x160] sm:$0xff] %vm73, %v67
    %117 = vst [vmem:[#allocation5 + $0x168] sm:$0xff] %v68
    %118 = vst [vmem:[#allocation5 + $0x170] sm:$0xff] %v69
    %119 = vst.msk [vmem:[#allocation5 + $0x178] sm:$0xff] %vm73, %v70
    // Predicated region
    $region10: #{tpu_custom_call.1} parent=1 // pred_check
      _
    $region11: #{tpu_custom_call.1} parent=1 // pred_check_branch
      %121 = sbr.rel (0) target = $region13
    $region12: #{tpu_custom_call.1} parent=1 // pred_region
      %s123 = ssub.s32 6144, 6144
      %124 = vsyncadd [#allocation4], %s123
      %s125 = sshll.u32 [#allocation5], 4
      %s126 = int_to_ptr.vmem [resolvable:$true] %s125
      %131 = dma.vmem_to_hbm [thread:$0]  %s126, 6144, %s1, [#allocation4], 384, 384, 24
    $region13: #{tpu_custom_call.1} parent=1 // pred_fallthru
      _
    // Predicated region
    $region14: #{tpu_custom_call.1} parent=1 // pred_check
      _
    $region15: #{tpu_custom_call.1} parent=1 // pred_check_branch
      %133 = sbr.rel (0) target = $region17
    $region16: #{tpu_custom_call.1} parent=1 // pred_region
      %134 = dma.done [#allocation4], 6144
    $region17: #{tpu_custom_call.1} parent=1 // pred_fallthru
      _
    %135 = vsyncpa [#allocation3], 1
    %136 = vsyncpa [#allocation4], 1

</llo_original>
